<compile_context>
chip_gen: v5e
topology: v5e:2x2
jax: 0.10.0
libtpu: 0.0.40
codegen_flags: <defaults>
</compile_context>

<pallas_src>
import functools

import numpy as np
import jax
import jax.numpy as jnp
from jax.experimental import pallas as pl
from jax.experimental.pallas import tpu as pltpu

BN_EPS = 1e-5
# BatchNorm folded into conv weights with gamma=1, beta=0, mean=0, var=1.
BN_SCALE = float(1.0 / np.sqrt(1.0 + BN_EPS))


# ----------------------------- Pallas kernels -----------------------------

def _gemm_kernel(*refs, relu, has_res):
    """Tiled (M,K)@(K,N) GEMM, fp32 accumulation, fused residual-add + ReLU."""
    if has_res:
        x_ref, w_ref, r_ref, o_ref, acc_ref = refs
    else:
        x_ref, w_ref, o_ref, acc_ref = refs
        r_ref = None
    k = pl.program_id(2)

    @pl.when(k == 0)
    def _():
        acc_ref[...] = jnp.zeros_like(acc_ref)

    acc_ref[...] += jnp.dot(x_ref[...], w_ref[...],
                            preferred_element_type=jnp.float32)

    @pl.when(k == pl.num_programs(2) - 1)
    def _():
        y = acc_ref[...]
        if r_ref is not None:
            y = y + r_ref[...].astype(jnp.float32)
        if relu:
            y = jnp.maximum(y, 0.0)
        o_ref[...] = y.astype(o_ref.dtype)


def _conv3x3_kernel(x_ref, w_ref, o_ref, acc_ref, *, H, W, relu):
    """Direct 3x3 / stride-1 / pad-1 conv on one image (no HBM im2col).

    x_ref: (1, (H+3)*(W+2), Cin)  spatially padded, row-flattened NHWC image.
    w_ref: (9, Cin, Cout)         HWIO taps (BN scale folded in).
    o_ref: (1, H*(W+2), Cout)     row-flattened output incl. 2 garbage cols/row
                                  (sliced away by the wrapper).
    Because the image is row-flattened with its padding, tap (dh, dw) is a
    constant row shift dh*(W+2)+dw of the input, so each tap is a plain 2-D
    bf16 GEMM accumulated into an fp32 VMEM scratch.
    """
    Wp = W + 2
    Mo = H * Wp
    for t in range(9):
        dh, dw = divmod(t, 3)
        off = dh * Wp + dw
        xs = x_ref[0, off:off + Mo, :]                       # (Mo, Cin)
        contrib = jnp.dot(xs, w_ref[t], preferred_element_type=jnp.float32)
        if t == 0:
            acc_ref[...] = contrib
        else:
            acc_ref[...] += contrib
    y = acc_ref[...]
    if relu:
        y = jnp.maximum(y, 0.0)
    o_ref[...] = y[None].astype(o_ref.dtype)


# --------------------------- Pallas call wrappers ---------------------------

def _round_up(x, m):
    return (x + m - 1) // m * m


_M_PREFS = (256, 512, 128)
_N_PREFS = (512, 256, 128)
_K_PREFS = (512, 384, 256, 128)


def _pick_block(dim, prefs):
    """Pick a block size dividing `dim` (preferring large, VMEM-safe tiles);
    small / odd dims fall back to a full-extent block (padded to 8)."""
    for p in prefs:
        if dim % p == 0:
            return p, dim
    if dim <= prefs[0]:
        padded = _round_up(dim, 8)
        return padded, padded
    padded = _round_up(dim, 128)
    return 128, padded


def pallas_matmul(x, w, residual=None, *, relu=False):
    """out = [relu]((x @ w) [+ residual]); bf16 operands, fp32 accumulation."""
    M, K = x.shape
    _, N = w.shape
    bm, Mp = _pick_block(M, _M_PREFS)
    bn, Np = _pick_block(N, _N_PREFS)
    bk, Kp = _pick_block(K, _K_PREFS)
    if Mp != M or Kp != K:
        x = jnp.pad(x, ((0, Mp - M), (0, Kp - K)))
    if Kp != K or Np != N:
        w = jnp.pad(w, ((0, Kp - K), (0, Np - N)))
    has_res = residual is not None
    if has_res and (Mp != M or Np != N):
        residual = jnp.pad(residual, ((0, Mp - M), (0, Np - N)))

    in_specs = [pl.BlockSpec((bm, bk), lambda i, j, k: (i, k)),
                pl.BlockSpec((bk, bn), lambda i, j, k: (k, j))]
    args = [x, w]
    if has_res:
        in_specs.append(pl.BlockSpec((bm, bn), lambda i, j, k: (i, j)))
        args.append(residual)

    out = pl.pallas_call(
        functools.partial(_gemm_kernel, relu=relu, has_res=has_res),
        out_shape=jax.ShapeDtypeStruct((Mp, Np), x.dtype),
        grid_spec=pltpu.PrefetchScalarGridSpec(
            num_scalar_prefetch=0,
            grid=(Mp // bm, Np // bn, Kp // bk),
            in_specs=in_specs,
            out_specs=pl.BlockSpec((bm, bn), lambda i, j, k: (i, j)),
            scratch_shapes=[pltpu.VMEM((bm, bn), jnp.float32)],
        ),
        compiler_params=pltpu.CompilerParams(
            dimension_semantics=("parallel", "parallel", "arbitrary")),
    )(*args)
    if Mp != M or Np != N:
        out = out[:M, :N]
    return out


@functools.partial(jax.jit, static_argnames=("relu", "stride"))
def conv1x1(x, w, residual=None, *, relu, stride=1):
    """1x1 conv (+ optional fused residual add + ReLU) as a single GEMM."""
    if stride > 1:
        x = x[:, ::stride, ::stride, :]
    N, H, W, C = x.shape
    Cout = w.shape[1]
    res2d = None if residual is None else residual.reshape(N * H * W, Cout)
    out = pallas_matmul(x.reshape(N * H * W, C), w, residual=res2d, relu=relu)
    return out.reshape(N, H, W, Cout)


@functools.partial(jax.jit, static_argnames=("relu",))
def conv3x3_direct(x, w, *, relu):
    """3x3 / stride-1 / pad-1 conv via the direct (im2col-free) Pallas kernel."""
    N, H, W, Cin = x.shape
    Cout = w.shape[-1]
    Wp = W + 2
    rows = (H + 3) * Wp
    Mo = H * Wp
    # Pad H by (1, 2) and W by (1, 1): the extra bottom row guarantees every
    # shifted tap read stays in-bounds after row-flattening.
    xp = jnp.pad(x, ((0, 0), (1, 2), (1, 1), (0, 0)))
    xf = xp.reshape(N, rows, Cin)
    wf = w.reshape(9, Cin, Cout)
    out = pl.pallas_call(
        functools.partial(_conv3x3_kernel, H=H, W=W, relu=relu),
        out_shape=jax.ShapeDtypeStruct((N, Mo, Cout), x.dtype),
        grid_spec=pltpu.PrefetchScalarGridSpec(
            num_scalar_prefetch=0,
            grid=(N,),
            in_specs=[pl.BlockSpec((1, rows, Cin), lambda b: (b, 0, 0)),
                      pl.BlockSpec((9, Cin, Cout), lambda b: (0, 0, 0))],
            out_specs=pl.BlockSpec((1, Mo, Cout), lambda b: (b, 0, 0)),
            scratch_shapes=[pltpu.VMEM((Mo, Cout), jnp.float32)],
        ),
        compiler_params=pltpu.CompilerParams(
            dimension_semantics=("parallel",)),
    )(xf, wf)
    return out.reshape(N, H, Wp, Cout)[:, :, :W, :]


@functools.partial(jax.jit,
                   static_argnames=("kh", "kw", "stride", "padding", "relu"))
def conv_im2col(x, w2d, *, kh, kw, stride, padding, relu):
    """General conv via im2col GEMM (only the 7x7 stem + 3 stride-2 3x3s)."""
    N, H, W, Cin = x.shape
    Cout = w2d.shape[1]
    Ho = (H + 2 * padding - kh) // stride + 1
    Wo = (W + 2 * padding - kw) // stride + 1
    xp = jnp.pad(x, ((0, 0), (padding, padding), (padding, padding), (0, 0)))
    cols = []
    for dh in range(kh):
        for dw in range(kw):
            cols.append(xp[:, dh:dh + (Ho - 1) * stride + 1:stride,
                           dw:dw + (Wo - 1) * stride + 1:stride, :])
    patches = jnp.concatenate(cols, axis=-1).reshape(N * Ho * Wo, kh * kw * Cin)
    out = pallas_matmul(patches, w2d, relu=relu)
    return out.reshape(N, Ho, Wo, Cout)


@jax.jit
def maxpool_3x3_s2_p1(x):
    # Single-use op: an XLA jnp.maximum tree over strided slices (per perf
    # review) -- avoids the previous 9x-stacked HBM materialization and the
    # whole-array gridless Pallas call.
    N, H, W, C = x.shape
    Ho = (H + 2 - 3) // 2 + 1
    Wo = (W + 2 - 3) // 2 + 1
    xp = jnp.pad(x, ((0, 0), (1, 1), (1, 1), (0, 0)), constant_values=-np.inf)
    out = None
    for dh in range(3):
        for dw in range(3):
            s = xp[:, dh:dh + (Ho - 1) * 2 + 1:2,
                   dw:dw + (Wo - 1) * 2 + 1:2, :]
            out = s if out is None else jnp.maximum(out, s)
    return out


def _pool_matrix(out_size, in_size):
    # Exact PyTorch AdaptiveAvgPool2d bin semantics.
    P = np.zeros((out_size, in_size), dtype=np.float32)
    for i in range(out_size):
        lo = (i * in_size) // out_size
        hi = ((i + 1) * in_size + out_size - 1) // out_size
        P[i, lo:hi] = 1.0 / (hi - lo)
    return P


@functools.partial(jax.jit, static_argnames=("out_size",))
def adaptive_avg_pool(x, *, out_size):
    N, H, W, C = x.shape
    Ph = jnp.asarray(_pool_matrix(out_size, H), x.dtype)
    Pw = jnp.asarray(_pool_matrix(out_size, W), x.dtype)
    # pool over H (adaptive-tile Pallas GEMM, no 128-padding blowup)
    t = jnp.transpose(x, (1, 0, 2, 3)).reshape(H, N * W * C)
    t = pallas_matmul(Ph, t)                       # (out, N*W*C)
    t = t.reshape(out_size, N, W, C)               # (i, n, w, c)
    # pool over W
    t = jnp.transpose(t, (2, 1, 0, 3)).reshape(W, N * out_size * C)
    t = pallas_matmul(Pw, t)                       # (out, N*out*C)
    t = t.reshape(out_size, N, out_size, C)        # (j, n, i, c)
    return jnp.transpose(t, (1, 2, 0, 3))          # (n, i, j, c) == NHWC


# ------------------------- ResNet-101 encoder glue -------------------------

class _KeyGen:
    def __init__(self, seed):
        self._base = jax.random.PRNGKey(seed)
        self._i = 0

    def __call__(self):
        self._i += 1
        return jax.random.fold_in(self._base, self._i)


_RESNET101_LAYERS = [(64, 3, 1), (128, 4, 2), (256, 23, 2), (512, 3, 2)]


def init_encoder_params(seed=0):
    # TODO(synk): pretrained ResNet101_Weights.DEFAULT cannot be loaded here;
    # all weights are deterministic random init, BatchNorm folded as an
    # identity scale (BN_SCALE) into the bf16 conv weights.
    kg = _KeyGen(seed)

    def conv_w(cin, cout, k):
        fan_in = cin * k * k
        w = jax.random.normal(kg(), (k, k, cin, cout), jnp.float32)
        w = w * np.sqrt(1.0 / fan_in) * BN_SCALE
        return w.astype(jnp.bfloat16)

    params = {"conv1": conv_w(3, 64, 7).reshape(7 * 7 * 3, 64), "layers": []}
    cin = 64
    for mid, nblocks, stride in _RESNET101_LAYERS:
        blocks = []
        cout = mid * 4
        for b in range(nblocks):
            s = stride if b == 0 else 1
            blk = {"w1": conv_w(cin, mid, 1).reshape(cin, mid),
                   "w3": conv_w(mid, cout, 1).reshape(mid, cout)}
            if s == 1:
                blk["w2"] = conv_w(mid, mid, 3)                        # HWIO
            else:
                blk["w2"] = conv_w(mid, mid, 3).reshape(9 * mid, mid)  # im2col
            if s != 1 or cin != cout:
                blk["wd"] = conv_w(cin, cout, 1).reshape(cin, cout)
            blocks.append(blk)
            cin = cout
        params["layers"].append(blocks)
    return params


def bottleneck_forward(x, blk, *, stride):
    out = conv1x1(x, blk["w1"], relu=True)
    if stride == 1:
        out = conv3x3_direct(out, blk["w2"], relu=True)
    else:
        out = conv_im2col(out, blk["w2"], kh=3, kw=3, stride=stride,
                          padding=1, relu=True)
    if "wd" in blk:
        identity = conv1x1(x, blk["wd"], relu=False, stride=stride)
    else:
        identity = x
    # conv3 (1x1) with the residual add + ReLU fused into the GEMM epilogue.
    return conv1x1(out, blk["w3"], residual=identity, relu=True)


def encoder_forward(x_nchw, params, encoder_image_size=14):
    x = jnp.transpose(x_nchw, (0, 2, 3, 1)).astype(jnp.bfloat16)  # NCHW->NHWC
    x = conv_im2col(x, params["conv1"], kh=7, kw=7, stride=2, padding=3,
                    relu=True)
    x = maxpool_3x3_s2_p1(x)
    for li, (mid, nblocks, lstride) in enumerate(_RESNET101_LAYERS):
        for b in range(nblocks):
            s = lstride if b == 0 else 1
            x = bottleneck_forward(x, params["layers"][li][b], stride=s)
    x = adaptive_avg_pool(x, out_size=encoder_image_size)
    return x.astype(jnp.float32)            # == torch out.permute(0, 2, 3, 1)


if __name__ == "__main__":
    params = init_encoder_params(seed=0)
    x = jax.random.normal(jax.random.PRNGKey(0), (2, 3, 64, 64), jnp.float32)
    out = encoder_forward(x, params, encoder_image_size=14)
    out = jax.block_until_ready(out)
    assert out.shape == (2, 14, 14, 2048), out.shape
    assert bool(jnp.all(jnp.isfinite(out))), "non-finite output"
    print("KERNEL_OK")
</pallas_src>

<mosaic_0001>
module attributes {stable_mosaic.version = 11 : i64} {
  func.func @_gemm_kernel(%arg0: i32, %arg1: i32, %arg2: i32, %arg3: memref<256x152xbf16, #tpu.memory_space<vmem>>, %arg4: memref<152x64xbf16, #tpu.memory_space<vmem>>, %arg5: memref<256x64xbf16, #tpu.memory_space<vmem>>, %arg6: memref<256x64xf32, #tpu.memory_space<vmem>>) attributes {dimension_semantics = [#tpu.dimension_semantics<parallel>, #tpu.dimension_semantics<parallel>, #tpu.dimension_semantics<arbitrary>], iteration_bounds = array<i64: 8, 1, 1>, scalar_prefetch = 0 : i64, scratch_operands = 1 : i64, tpu.core_type = #tpu.core_type<tc>, window_params = [{transform_indices = @transform_0, window_bounds = array<i64: 256, 152>}, {transform_indices = @transform_1, window_bounds = array<i64: 152, 64>}, {transform_indices = @transform_2, window_bounds = array<i64: 256, 64>}]} {
    %c0_i32 = arith.constant 0 : i32
    %0 = arith.cmpi eq, %arg2, %c0_i32 : i32
    %1 = arith.extui %0 : i1 to i32
    %c0_i32_0 = arith.constant 0 : i32
    %2 = arith.cmpi ne, %1, %c0_i32_0 : i32
    scf.if %2 {
      %cst_10 = arith.constant 0.000000e+00 : f32
      %12 = vector.broadcast %cst_10 : f32 to vector<256x64xf32>
      %c0_11 = arith.constant 0 : index
      %c0_12 = arith.constant 0 : index
      %13 = vector.load %arg6[%c0_11, %c0_12] : memref<256x64xf32, #tpu.memory_space<vmem>>, vector<256x64xf32>
      tpu.vector_store %arg6[%c0_11, %c0_12], %12 {strides = array<i32>} : memref<256x64xf32, #tpu.memory_space<vmem>>, vector<256x64xf32>,
    } else {
    }
    %c0 = arith.constant 0 : index
    %c0_1 = arith.constant 0 : index
    %3 = vector.load %arg6[%c0, %c0_1] : memref<256x64xf32, #tpu.memory_space<vmem>>, vector<256x64xf32>
    %c0_2 = arith.constant 0 : index
    %c0_3 = arith.constant 0 : index
    %4 = vector.load %arg3[%c0_2, %c0_3] : memref<256x152xbf16, #tpu.memory_space<vmem>>, vector<256x152xbf16>
    %c0_4 = arith.constant 0 : index
    %c0_5 = arith.constant 0 : index
    %5 = vector.load %arg4[%c0_4, %c0_5] : memref<152x64xbf16, #tpu.memory_space<vmem>>, vector<152x64xbf16>
    %cst = arith.constant dense<0.000000e+00> : vector<256x64xf32>
    %6 = tpu.matmul %4, %5, %cst {dimension_numbers = #tpu.dot_dimension_numbers<[1], [0], [0], [1], [0, 0, 1, 1], [], []>} : vector<256x152xbf16>, vector<152x64xbf16>, vector<256x64xf32> -> vector<256x64xf32>
    %7 = arith.addf %3, %6 : vector<256x64xf32>
    %c0_6 = arith.constant 0 : index
    %c0_7 = arith.constant 0 : index
    %8 = vector.load %arg6[%c0_6, %c0_7] : memref<256x64xf32, #tpu.memory_space<vmem>>, vector<256x64xf32>
    tpu.vector_store %arg6[%c0_6, %c0_7], %7 {strides = array<i32>} : memref<256x64xf32, #tpu.memory_space<vmem>>, vector<256x64xf32>,
    %c0_i32_8 = arith.constant 0 : i32
    %9 = arith.cmpi eq, %arg2, %c0_i32_8 : i32
    %10 = arith.extui %9 : i1 to i32
    %c0_i32_9 = arith.constant 0 : i32
    %11 = arith.cmpi ne, %10, %c0_i32_9 : i32
    scf.if %11 {
      %c0_10 = arith.constant 0 : index
      %c0_11 = arith.constant 0 : index
      %12 = vector.load %arg6[%c0_10, %c0_11] : memref<256x64xf32, #tpu.memory_space<vmem>>, vector<256x64xf32>
      %cst_12 = arith.constant 0.000000e+00 : f32
      %13 = vector.broadcast %cst_12 : f32 to vector<256x64xf32>
      %14 = arith.maximumf %12, %13 : vector<256x64xf32>
      %15 = arith.truncf %14 : vector<256x64xf32> to vector<256x64xbf16>
      %c0_13 = arith.constant 0 : index
      %c0_14 = arith.constant 0 : index
      %16 = vector.load %arg5[%c0_13, %c0_14] : memref<256x64xbf16, #tpu.memory_space<vmem>>, vector<256x64xbf16>
      tpu.vector_store %arg5[%c0_13, %c0_14], %15 {strides = array<i32>} : memref<256x64xbf16, #tpu.memory_space<vmem>>, vector<256x64xbf16>,
    } else {
    }
    return
  }
  func.func @transform_0(%arg0: i32, %arg1: i32, %arg2: i32) -> (i32, i32) {
    %c0_i32 = arith.constant 0 : i32
    return %arg0, %arg2 : i32, i32
  }
  func.func @transform_1(%arg0: i32, %arg1: i32, %arg2: i32) -> (i32, i32) {
    %c0_i32 = arith.constant 0 : i32
    return %arg2, %arg1 : i32, i32
  }
  func.func @transform_2(%arg0: i32, %arg1: i32, %arg2: i32) -> (i32, i32) {
    %c0_i32 = arith.constant 0 : i32
    return %arg0, %arg1 : i32, i32
  }
}

</mosaic_0001>

<llo_original>
// kernel: conv_im2col.1
$region0: #{conv_im2col.1}
  #allocation0 [shape = 'u32[]', space=smem, size = 0x4, offset = 0x4, fixed_abs, tag = 'smem constant byte address 0x4 - core index']
  #allocation1 [shape = 'u32[72,128]{1,0:T(1,128)}', space=vmem, size = 0x9000, scoped, tag = 'internal scratch']
  #allocation2 [shape = 'f32[256,64]{1,0:T(8,128)}', space=vmem, size = 0x20000, scoped, tag = 'scratch operand']
  %s0 = inlined_call_operand.vmem [shape: bf16[2048,152], index: 0, kind: input, shape index: {}]
  %s1 = inlined_call_operand.vmem [shape: bf16[152,64], index: 1, kind: input, shape index: {}]
  %s2 = inlined_call_operand.hbm [shape: bf16[2048,64], index: 2, kind: output, shape index: {}]
  %s3 = sld [smem:[#allocation0]]
  $region49: #{conv_im2col.1} parent=0
    _
  %s5 = ssub.s32 1, %s3
  %s6 = scalar_select 0, %s5, %s3
  $region1: #{conv_im2col.1} parent=0
    #allocation3 [shape = 'u8[131072]{0}', space=vmem, size = 0x20000, scoped, tag = 'output window, operand 0']
    #allocation4 [shape = 's32[2]{0}', space=sflag, size = 0x8, scoped, tag = 'scoped memory for conv_im2col.1']
    %7 = vsyncpa [#allocation4], 0
    %s8 = scalar_lea.sflag [#allocation4], 1
    %9 = vsyncpa %s8, 0
    loop: start=0, step=1, limit=10
    $region2: #{conv_im2col.1} parent=1 // loop_pre_header
      _
    $region3: #{conv_im2col.1} parent=1 // loop_header
      %s11 = sphi 0, %s15
      %p12 = scmp.ge.s32.totalorder %s11, 10
      %s18 = sphi 0, %s37
      %s19 = sphi 0, %s33
      %s20 = sphi 0, %s29
      %s21 = sphi 0, %s18
      %s22 = sphi 0, %s19
      %s23 = sphi 0, %s20
      %s24 = sphi 0, %s21
      %s25 = sphi 0, %s22
      %s26 = sphi 0, %s23
      %s42 = sphi 0, %s44
      %s45 = sphi 0, %s42
      %s46 = sphi 0, %s45
      %s62 = sphi 0, %s46
      %s70 = sphi 0, %s72
      %s73 = sphi 0, %s70
      %s74 = sphi 0, %s73
      %s90 = sphi 0, %s74
      %s98 = sphi 0, %s100
      %s101 = sphi 0, %s98
      %s102 = sphi 0, %s101
      %s118 = sphi 0, %s102
    $region4: #{conv_im2col.1} parent=1 // loop_header_branch
      %14 = sbr.rel (%p12) target = $region8
    $region5: #{conv_im2col.1} parent=1 // loop_body
      %s16 = ssub.s32 %s11, 1
      %s17 = ssub.s32 %s11, 2
      %s27 = sadd.s32 1, %s20
      %p28 = scmp.ge.s32.totalorder %s27, 1
      %s29 = scalar_select %p28, 0, %s27
      %s30 = sadd.s32 1, %s19
      %s31 = scalar_select %p28, %s30, %s19
      %p32 = scmp.ge.s32.totalorder %s31, 1
      %s33 = scalar_select %p32, 0, %s31
      %s34 = sadd.s32 1, %s18
      %s35 = scalar_select %p32, %s34, %s18
      %p36 = scmp.ge.s32.totalorder %s35, 8
      %s37 = scalar_select %p36, 0, %s35
      %s38 = ssub.s32 %s18, %s37
      %s39 = ssub.s32 %s20, %s29
      %s40 = sor.u32 %s38, %s39
      %p41 = scmp.eq.s32.totalorder %s40, 0
      %s43 = sadd.s32 %s42, 1
      %s44 = scalar_select %p41, %s42, %s43
      %p47 = pneg %p41
      %p48 = scmp.eq.s32.totalorder %s11, 7
      %p49 = por %p47, %p48
      %p50 = scmp.ne.s32.totalorder %s42, %s45
      %p51 = scmp.eq.s32.totalorder %s11, 0
      %p52 = por %p50, %p51
      %p53 = scmp.ne.s32.totalorder %s42, %s45
      %p54 = scmp.eq.s32.totalorder %s16, 7
      %p55 = por %p53, %p54
      %p56 = scmp.ne.s32.totalorder %s45, %s46
      %p57 = scmp.eq.s32.totalorder %s16, 0
      %p58 = por %p56, %p57
      %p59 = scmp.ne.s32.totalorder %s45, %s46
      %p60 = scmp.eq.s32.totalorder %s17, 7
      %p61 = por %p59, %p60
      %p63 = scmp.ne.s32.totalorder %s46, %s62
      %p64 = scmp.eq.s32.totalorder %s17, 0
      %p65 = por %p63, %p64
      %s66 = ssub.s32 %s20, %s29
      %s67 = ssub.s32 %s19, %s33
      %s68 = sor.u32 %s66, %s67
      %p69 = scmp.eq.s32.totalorder %s68, 0
      %s71 = sadd.s32 %s70, 1
      %s72 = scalar_select %p69, %s70, %s71
      %p75 = pneg %p69
      %p76 = scmp.eq.s32.totalorder %s11, 7
      %p77 = por %p75, %p76
      %p78 = scmp.ne.s32.totalorder %s70, %s73
      %p79 = scmp.eq.s32.totalorder %s11, 0
      %p80 = por %p78, %p79
      %p81 = scmp.ne.s32.totalorder %s70, %s73
      %p82 = scmp.eq.s32.totalorder %s16, 7
      %p83 = por %p81, %p82
      %p84 = scmp.ne.s32.totalorder %s73, %s74
      %p85 = scmp.eq.s32.totalorder %s16, 0
      %p86 = por %p84, %p85
      %p87 = scmp.ne.s32.totalorder %s73, %s74
      %p88 = scmp.eq.s32.totalorder %s17, 7
      %p89 = por %p87, %p88
      %p91 = scmp.ne.s32.totalorder %s74, %s90
      %p92 = scmp.eq.s32.totalorder %s17, 0
      %p93 = por %p91, %p92
      %s94 = ssub.s32 %s18, %s37
      %s95 = ssub.s32 %s19, %s33
      %s96 = sor.u32 %s94, %s95
      %p97 = scmp.eq.s32.totalorder %s96, 0
      %s99 = sadd.s32 %s98, 1
      %s100 = scalar_select %p97, %s98, %s99
      %p103 = pneg %p97
      %p104 = scmp.eq.s32.totalorder %s11, 7
      %p105 = por %p103, %p104
      %p106 = scmp.ne.s32.totalorder %s98, %s101
      %p107 = scmp.eq.s32.totalorder %s11, 0
      %p108 = por %p106, %p107
      %p109 = scmp.ne.s32.totalorder %s98, %s101
      %p110 = scmp.eq.s32.totalorder %s16, 7
      %p111 = por %p109, %p110
      %p112 = scmp.ne.s32.totalorder %s101, %s102
      %p113 = scmp.eq.s32.totalorder %s16, 0
      %p114 = por %p112, %p113
      %p115 = scmp.ne.s32.totalorder %s101, %s102
      %p116 = scmp.eq.s32.totalorder %s17, 7
      %p117 = por %p115, %p116
      %p119 = scmp.ne.s32.totalorder %s102, %s118
      %p120 = scmp.eq.s32.totalorder %s17, 0
      %p121 = por %p119, %p120
      %p122 = scmp.le.s32.totalorder 1, %s11
      %p123 = scmp.lt.s32.totalorder %s11, 9
      %p124 = pnand %p122, %p123
      %p125 = pneg %p124
      // Predicated region
      $region9: #{conv_im2col.1} parent=5 // pred_check
        _
      $region10: #{conv_im2col.1} parent=5 // pred_check_branch
        %127 = sbr.rel (%p124) target = $region12
      $region11: #{conv_im2col.1} parent=5 // pred_region
        %s128 = ssub.s32 %s11, 1
        // Predicated region
        $region13: #{conv_im2col.1} parent=11 // pred_check
          %p129 = pneg %p86
        $region14: #{conv_im2col.1} parent=11 // pred_check_branch
          %131 = sbr.rel (%p129) target = $region16
        $region15: #{conv_im2col.1} parent=11 // pred_region
          %s132 = smul.u32 19, %s23
          %p133 = scmp.lt.s32.totalorder %s132, 18
          %s134 = scalar_select %p133, %s132, 18
          %p135 = scmp.lt.s32.totalorder %s22, 0
          %s136 = scalar_select %p135, %s22, 0
          %s137 = sadd.s32 %s136, %s134
          %s138 = smul.addr %s137, 4
          %s139 = scalar_lea.vmem %s1, %s138
          %s140 = smul.u32 19, %s23
        $region16: #{conv_im2col.1} parent=11 // pred_fallthru
          _
      $region12: #{conv_im2col.1} parent=5 // pred_fallthru
        _
      %p141 = scmp.lt.s32.totalorder %s11, 8
      // Predicated region
      $region17: #{conv_im2col.1} parent=5 // pred_check
        %p142 = pneg %p141
      $region18: #{conv_im2col.1} parent=5 // pred_check_branch
        %144 = sbr.rel (%p142) target = $region20
      $region19: #{conv_im2col.1} parent=5 // pred_region
        // Predicated region
        $region21: #{conv_im2col.1} parent=19 // pred_check
          %p145 = pneg %p52
        $region22: #{conv_im2col.1} parent=19 // pred_check_branch
          %147 = sbr.rel (%p145) target = $region24
        $region23: #{conv_im2col.1} parent=19 // pred_region
          %s148 = smul.u32 32, %s18
          %s149 = smul.u32 2, %s20
          %p150 = scmp.lt.s32.totalorder %s148, 255
          %s151 = scalar_select %p150, %s148, 255
          %p152 = scmp.lt.s32.totalorder %s149, 1
          %s153 = scalar_select %p152, %s149, 1
          %s154 = smul.addr %s151, 2
          %s155 = sadd.s32 %s153, %s154
          %s156 = smul.addr %s155, 4
          %s157 = scalar_lea.vmem %s0, %s156
          %s158 = smul.u32 32, %s18
          %s159 = smul.u32 2, %s20
        $region24: #{conv_im2col.1} parent=19 // pred_fallthru
          _
      $region20: #{conv_im2col.1} parent=5 // pred_fallthru
        _
      %p160 = scmp.le.s32.totalorder 1, %s11
      %p161 = scmp.lt.s32.totalorder %s11, 9
      %p162 = pnand %p160, %p161
      %p163 = pneg %p162
      // Predicated region
      $region25: #{conv_im2col.1} parent=5 // pred_check
        _
      $region26: #{conv_im2col.1} parent=5 // pred_check_branch
        %165 = sbr.rel (%p162) target = $region28
      $region27: #{conv_im2col.1} parent=5 // pred_region
        %s166 = ssub.s32 %s11, 1
        %s167 = smul.u32 32, %s21
        %s168 = smul.u32 2, %s23
        %p169 = scmp.lt.s32.totalorder %s167, 255
        %s170 = scalar_select %p169, %s167, 255
        %p171 = scmp.lt.s32.totalorder %s168, 1
        %s172 = scalar_select %p171, %s168, 1
        %s173 = smul.addr %s170, 2
        %s174 = sadd.s32 %s172, %s173
        %s175 = smul.addr %s174, 4
        %s176 = scalar_lea.vmem %s0, %s175
        %p177 = pneg %p58
        %p178 = pneg %p55
        %s179 = smul.u32 19, %s23
        %p180 = scmp.lt.s32.totalorder %s179, 18
        %s181 = scalar_select %p180, %s179, 18
        %p182 = scmp.lt.s32.totalorder %s22, 0
        %s183 = scalar_select %p182, %s22, 0
        %s184 = sadd.s32 %s183, %s181
        %s185 = smul.addr %s184, 4
        %s186 = scalar_lea.vmem %s1, %s185
        %p187 = pneg %p86
        %p188 = pneg %p83
        %p189 = pneg %p114
        %p190 = pneg %p111
        %s191 = sand.u32 %s101, 1
        %s192 = scalar_lea.sflag [#allocation4], %s191
        %s193 = sand.u32 %s101, 1
        %s194 = smul.addr %s193, 128
        %s195 = scalar_lea.vmem [#allocation3], %s194
        %s196 = smul.u32 32, %s21
        %s197 = smul.u32 2, %s23
        %p198 = scmp.lt.s32.totalorder %s196, 255
        %s199 = scalar_select %p198, %s196, 255
        %p200 = scmp.lt.s32.totalorder %s197, 1
        %s201 = scalar_select %p200, %s197, 1
        %s202 = smul.addr %s199, 2
        %s203 = sadd.s32 %s201, %s202
        %s204 = smul.addr %s203, 4
        %s205 = scalar_lea.vmem %s0, %s204
        %s206 = smul.u32 32, %s21
        %s207 = smul.u32 2, %s23
        %s208 = smul.u32 19, %s23
        %p209 = scmp.lt.s32.totalorder %s208, 18
        %s210 = scalar_select %p209, %s208, 18
        %p211 = scmp.lt.s32.totalorder %s22, 0
        %s212 = scalar_select %p211, %s22, 0
        %s213 = sadd.s32 %s212, %s210
        %s214 = smul.addr %s213, 4
        %s215 = scalar_lea.vmem %s1, %s214
        %s216 = smul.u32 19, %s23
        %s217 = smul.u32 32, %s21
        %p219 = scmp.eq.s32.totalorder %s23, 0
        // Predicated region
        $region29: #{conv_im2col.1} parent=27 // pred_check
          %p220 = pneg %p219
        $region30: #{conv_im2col.1} parent=27 // pred_check_branch
          %222 = sbr.rel (%p220) target = $region32
        $region31: #{conv_im2col.1} parent=27 // pred_region
          %vm223 = vcmask 523264
          %224 = vst.msk [vmem:[#allocation2] sm:$0xff] %vm223, 0.0
          %225 = vst.msk [vmem:[#allocation2 + $0x8] sm:$0xff] %vm223, 0.0
          %226 = vst.msk [vmem:[#allocation2 + $0x10] sm:$0xff] %vm223, 0.0
          %227 = vst.msk [vmem:[#allocation2 + $0x18] sm:$0xff] %vm223, 0.0
          %228 = vst.msk [vmem:[#allocation2 + $0x20] sm:$0xff] %vm223, 0.0
          %229 = vst.msk [vmem:[#allocation2 + $0x28] sm:$0xff] %vm223, 0.0
          %230 = vst.msk [vmem:[#allocation2 + $0x30] sm:$0xff] %vm223, 0.0
          %231 = vst.msk [vmem:[#allocation2 + $0x38] sm:$0xff] %vm223, 0.0
          %232 = vst.msk [vmem:[#allocation2 + $0x40] sm:$0xff] %vm223, 0.0
          %233 = vst.msk [vmem:[#allocation2 + $0x48] sm:$0xff] %vm223, 0.0
          %234 = vst.msk [vmem:[#allocation2 + $0x50] sm:$0xff] %vm223, 0.0
          %235 = vst.msk [vmem:[#allocation2 + $0x58] sm:$0xff] %vm223, 0.0
          %236 = vst.msk [vmem:[#allocation2 + $0x60] sm:$0xff] %vm223, 0.0
          %237 = vst.msk [vmem:[#allocation2 + $0x68] sm:$0xff] %vm223, 0.0
          %238 = vst.msk [vmem:[#allocation2 + $0x70] sm:$0xff] %vm223, 0.0
          %239 = vst.msk [vmem:[#allocation2 + $0x78] sm:$0xff] %vm223, 0.0
          %240 = vst.msk [vmem:[#allocation2 + $0x80] sm:$0xff] %vm223, 0.0
          %241 = vst.msk [vmem:[#allocation2 + $0x88] sm:$0xff] %vm223, 0.0
          %242 = vst.msk [vmem:[#allocation2 + $0x90] sm:$0xff] %vm223, 0.0
          %243 = vst.msk [vmem:[#allocation2 + $0x98] sm:$0xff] %vm223, 0.0
          %244 = vst.msk [vmem:[#allocation2 + $0xa0] sm:$0xff] %vm223, 0.0
          %245 = vst.msk [vmem:[#allocation2 + $0xa8] sm:$0xff] %vm223, 0.0
          %246 = vst.msk [vmem:[#allocation2 + $0xb0] sm:$0xff] %vm223, 0.0
          %247 = vst.msk [vmem:[#allocation2 + $0xb8] sm:$0xff] %vm223, 0.0
          %248 = vst.msk [vmem:[#allocation2 + $0xc0] sm:$0xff] %vm223, 0.0
          %249 = vst.msk [vmem:[#allocation2 + $0xc8] sm:$0xff] %vm223, 0.0
          %250 = vst.msk [vmem:[#allocation2 + $0xd0] sm:$0xff] %vm223, 0.0
          %251 = vst.msk [vmem:[#allocation2 + $0xd8] sm:$0xff] %vm223, 0.0
          %252 = vst.msk [vmem:[#allocation2 + $0xe0] sm:$0xff] %vm223, 0.0
          %253 = vst.msk [vmem:[#allocation2 + $0xe8] sm:$0xff] %vm223, 0.0
          %254 = vst.msk [vmem:[#allocation2 + $0xf0] sm:$0xff] %vm223, 0.0
          %255 = vst.msk [vmem:[#allocation2 + $0xf8] sm:$0xff] %vm223, 0.0
        $region32: #{conv_im2col.1} parent=27 // pred_fallthru
          _
        %v256 = vld [vmem:[#allocation2] sm:$0xff]
        %v257 = vld [vmem:[#allocation2 + $0x8] sm:$0xff]
        %v258 = vld [vmem:[#allocation2 + $0x10] sm:$0xff]
        %v259 = vld [vmem:[#allocation2 + $0x18] sm:$0xff]
        %v260 = vld [vmem:[#allocation2 + $0x20] sm:$0xff]
        %v261 = vld [vmem:[#allocation2 + $0x28] sm:$0xff]
        %v262 = vld [vmem:[#allocation2 + $0x30] sm:$0xff]
        %v263 = vld [vmem:[#allocation2 + $0x38] sm:$0xff]
        %v264 = vld [vmem:[#allocation2 + $0x40] sm:$0xff]
        %v265 = vld [vmem:[#allocation2 + $0x48] sm:$0xff]
        %v266 = vld [vmem:[#allocation2 + $0x50] sm:$0xff]
        %v267 = vld [vmem:[#allocation2 + $0x58] sm:$0xff]
        %v268 = vld [vmem:[#allocation2 + $0x60] sm:$0xff]
        %v269 = vld [vmem:[#allocation2 + $0x68] sm:$0xff]
        %v270 = vld [vmem:[#allocation2 + $0x70] sm:$0xff]
        %v271 = vld [vmem:[#allocation2 + $0x78] sm:$0xff]
        %v272 = vld [vmem:[#allocation2 + $0x80] sm:$0xff]
        %v273 = vld [vmem:[#allocation2 + $0x88] sm:$0xff]
        %v274 = vld [vmem:[#allocation2 + $0x90] sm:$0xff]
        %v275 = vld [vmem:[#allocation2 + $0x98] sm:$0xff]
        %v276 = vld [vmem:[#allocation2 + $0xa0] sm:$0xff]
        %v277 = vld [vmem:[#allocation2 + $0xa8] sm:$0xff]
        %v278 = vld [vmem:[#allocation2 + $0xb0] sm:$0xff]
        %v279 = vld [vmem:[#allocation2 + $0xb8] sm:$0xff]
        %v280 = vld [vmem:[#allocation2 + $0xc0] sm:$0xff]
        %v281 = vld [vmem:[#allocation2 + $0xc8] sm:$0xff]
        %v282 = vld [vmem:[#allocation2 + $0xd0] sm:$0xff]
        %v283 = vld [vmem:[#allocation2 + $0xd8] sm:$0xff]
        %v284 = vld [vmem:[#allocation2 + $0xe0] sm:$0xff]
        %v285 = vld [vmem:[#allocation2 + $0xe8] sm:$0xff]
        %v286 = vld [vmem:[#allocation2 + $0xf0] sm:$0xff]
        %v287 = vld [vmem:[#allocation2 + $0xf8] sm:$0xff]
        %v288 = vld [vmem:[%s205] sm:$0xff]
        %v289 = vld [vmem:[%s205 + $0x8] sm:$0xff]
        %v290 = vld [vmem:[%s205 + $0x10] sm:$0xff]
        %v291 = vld [vmem:[%s205 + $0x18] sm:$0xff]
        %v292 = vld [vmem:[%s205 + $0x20] sm:$0xff]
        %v293 = vld [vmem:[%s205 + $0x28] sm:$0xff]
        %v294 = vld [vmem:[%s205 + $0x30] sm:$0xff]
        %v295 = vld [vmem:[%s205 + $0x38] sm:$0xff]
        %v296 = vld [vmem:[%s205 + $0x40] sm:$0xff]
        %v297 = vld [vmem:[%s205 + $0x48] sm:$0xff]
        %v298 = vld [vmem:[%s205 + $0x50] sm:$0xff]
        %v299 = vld [vmem:[%s205 + $0x58] sm:$0xff]
        %v300 = vld [vmem:[%s205 + $0x60] sm:$0xff]
        %v301 = vld [vmem:[%s205 + $0x68] sm:$0xff]
        %v302 = vld [vmem:[%s205 + $0x70] sm:$0xff]
        %v303 = vld [vmem:[%s205 + $0x78] sm:$0xff]
        %v304 = vld [vmem:[%s205 + $0x80] sm:$0xff]
        %v305 = vld [vmem:[%s205 + $0x88] sm:$0xff]
        %v306 = vld [vmem:[%s205 + $0x90] sm:$0xff]
        %v307 = vld [vmem:[%s205 + $0x98] sm:$0xff]
        %v308 = vld [vmem:[%s205 + $0xa0] sm:$0xff]
        %v309 = vld [vmem:[%s205 + $0xa8] sm:$0xff]
        %v310 = vld [vmem:[%s205 + $0xb0] sm:$0xff]
        %v311 = vld [vmem:[%s205 + $0xb8] sm:$0xff]
        %v312 = vld [vmem:[%s205 + $0xc0] sm:$0xff]
        %v313 = vld [vmem:[%s205 + $0xc8] sm:$0xff]
        %v314 = vld [vmem:[%s205 + $0xd0] sm:$0xff]
        %v315 = vld [vmem:[%s205 + $0xd8] sm:$0xff]
        %v316 = vld [vmem:[%s205 + $0xe0] sm:$0xff]
        %v317 = vld [vmem:[%s205 + $0xe8] sm:$0xff]
        %v318 = vld [vmem:[%s205 + $0xf0] sm:$0xff]
        %v319 = vld [vmem:[%s205 + $0xf8] sm:$0xff]
        %v320 = vld [vmem:[%s215] sm:$0xf]
        %v321 = vld [vmem:[%s215 + $0x4] sm:$0xf]
        %v322 = vld [vmem:[%s215 + $0x8] sm:$0xf]
        %v323 = vld [vmem:[%s215 + $0xc] sm:$0xf]
        %v324 = vld [vmem:[%s215 + $0x10] sm:$0xf]
        %v325 = vld [vmem:[%s215 + $0x14] sm:$0xf]
        %v326 = vld [vmem:[%s215 + $0x18] sm:$0xf]
        %v327 = vld [vmem:[%s215 + $0x1c] sm:$0xf]
        %v328 = vld [vmem:[%s215 + $0x20] sm:$0xf]
        %v329 = vld [vmem:[%s215 + $0x24] sm:$0xf]
        %v330 = vld [vmem:[%s215 + $0x28] sm:$0xf]
        %v331 = vld [vmem:[%s215 + $0x2c] sm:$0xf]
        %v332 = vld [vmem:[%s215 + $0x30] sm:$0xf]
        %v333 = vld [vmem:[%s215 + $0x34] sm:$0xf]
        %v334 = vld [vmem:[%s215 + $0x38] sm:$0xf]
        %v335 = vld [vmem:[%s215 + $0x3c] sm:$0xf]
        %v336 = vld [vmem:[%s215 + $0x40] sm:$0xf]
        %v337 = vld [vmem:[%s215 + $0x44] sm:$0xf]
        %v338 = vld [vmem:[%s215 + $0x48] sm:$0xf]
        %v371 = vunpack.c.l.b16 %v288
        %v372 = vunpack.c.h.b16 %v288
        %v373 = vunpack.c.l.b16 %v289
        %v374 = vunpack.c.h.b16 %v289
        %v375 = vunpack.c.l.b16 %v290
        %v376 = vunpack.c.h.b16 %v290
        %v377 = vunpack.c.l.b16 %v291
        %v378 = vunpack.c.h.b16 %v291
        %v379 = vunpack.c.l.b16 %v292
        %v380 = vunpack.c.h.b16 %v292
        %v381 = vunpack.c.l.b16 %v293
        %v382 = vunpack.c.h.b16 %v293
        %v383 = vunpack.c.l.b16 %v294
        %v384 = vunpack.c.h.b16 %v294
        %v385 = vunpack.c.l.b16 %v295
        %v386 = vunpack.c.h.b16 %v295
        %v387 = vunpack.c.l.b16 %v296
        %v388 = vunpack.c.h.b16 %v296
        %v389 = vunpack.c.l.b16 %v297
        %v390 = vunpack.c.h.b16 %v297
        %v391 = vunpack.c.l.b16 %v298
        %v392 = vunpack.c.h.b16 %v298
        %v393 = vunpack.c.l.b16 %v299
        %v394 = vunpack.c.h.b16 %v299
        %v395 = vunpack.c.l.b16 %v300
        %v396 = vunpack.c.h.b16 %v300
        %v397 = vunpack.c.l.b16 %v301
        %v398 = vunpack.c.h.b16 %v301
        %v399 = vunpack.c.l.b16 %v302
        %v400 = vunpack.c.h.b16 %v302
        %v401 = vunpack.c.l.b16 %v303
        %v402 = vunpack.c.h.b16 %v303
        %v403 = vunpack.c.l.b16 %v304
        %v404 = vunpack.c.h.b16 %v304
        %v405 = vunpack.c.l.b16 %v305
        %v406 = vunpack.c.h.b16 %v305
        %v407 = vunpack.c.l.b16 %v306
        %v408 = vunpack.c.h.b16 %v306
        %v409 = vunpack.c.l.b16 %v307
        %v410 = vunpack.c.h.b16 %v307
        %v411 = vunpack.c.l.b16 %v308
        %v412 = vunpack.c.h.b16 %v308
        %v413 = vunpack.c.l.b16 %v309
        %v414 = vunpack.c.h.b16 %v309
        %v415 = vunpack.c.l.b16 %v310
        %v416 = vunpack.c.h.b16 %v310
        %v417 = vunpack.c.l.b16 %v311
        %v418 = vunpack.c.h.b16 %v311
        %v419 = vunpack.c.l.b16 %v312
        %v420 = vunpack.c.h.b16 %v312
        %v421 = vunpack.c.l.b16 %v313
        %v422 = vunpack.c.h.b16 %v313
        %v423 = vunpack.c.l.b16 %v314
        %v424 = vunpack.c.h.b16 %v314
        %v425 = vunpack.c.l.b16 %v315
        %v426 = vunpack.c.h.b16 %v315
        %v427 = vunpack.c.l.b16 %v316
        %v428 = vunpack.c.h.b16 %v316
        %v429 = vunpack.c.l.b16 %v317
        %v430 = vunpack.c.h.b16 %v317
        %v431 = vunpack.c.l.b16 %v318
        %v432 = vunpack.c.h.b16 %v318
        %v433 = vunpack.c.l.b16 %v319
        %v434 = vunpack.c.h.b16 %v319
        %v435 = vpack.c.b16 %v373, %v371
        %v436 = vpack.c.b16 %v374, %v372
        %v437 = vpack.c.b16 %v377, %v375
        %v438 = vpack.c.b16 %v378, %v376
        %v439 = vpack.c.b16 %v381, %v379
        %v440 = vpack.c.b16 %v382, %v380
        %v441 = vpack.c.b16 %v385, %v383
        %v442 = vpack.c.b16 %v386, %v384
        %v443 = vpack.c.b16 %v389, %v387
        %v444 = vpack.c.b16 %v390, %v388
        %v445 = vpack.c.b16 %v393, %v391
        %v446 = vpack.c.b16 %v394, %v392
        %v447 = vpack.c.b16 %v397, %v395
        %v448 = vpack.c.b16 %v398, %v396
        %v449 = vpack.c.b16 %v401, %v399
        %v450 = vpack.c.b16 %v402, %v400
        %v451 = vpack.c.b16 %v405, %v403
        %v452 = vpack.c.b16 %v406, %v404
        %v453 = vpack.c.b16 %v409, %v407
        %v454 = vpack.c.b16 %v410, %v408
        %v455 = vpack.c.b16 %v413, %v411
        %v456 = vpack.c.b16 %v414, %v412
        %v457 = vpack.c.b16 %v417, %v415
        %v458 = vpack.c.b16 %v418, %v416
        %v459 = vpack.c.b16 %v421, %v419
        %v460 = vpack.c.b16 %v422, %v420
        %v461 = vpack.c.b16 %v425, %v423
        %v462 = vpack.c.b16 %v426, %v424
        %v463 = vpack.c.b16 %v429, %v427
        %v464 = vpack.c.b16 %v430, %v428
        %v465 = vpack.c.b16 %v433, %v431
        %v466 = vpack.c.b16 %v434, %v432
        %v502 = vunpack.c.l.b16 %v320
        %v503 = vunpack.c.l.b16 %v321
        %v504 = vunpack.c.l.b16 %v322
        %v505 = vunpack.c.l.b16 %v323
        %v506 = vunpack.c.l.b16 %v324
        %v507 = vunpack.c.l.b16 %v325
        %v508 = vunpack.c.l.b16 %v326
        %v509 = vunpack.c.l.b16 %v327
        %v510 = vunpack.c.l.b16 %v328
        %v511 = vunpack.c.l.b16 %v329
        %v512 = vunpack.c.l.b16 %v330
        %v513 = vunpack.c.l.b16 %v331
        %v514 = vunpack.c.l.b16 %v332
        %v515 = vunpack.c.l.b16 %v333
        %v516 = vunpack.c.l.b16 %v334
        %v517 = vunpack.c.l.b16 %v335
        %v518 = vunpack.c.l.b16 %v336
        %v519 = vunpack.c.l.b16 %v337
        %v520 = vunpack.c.l.b16 %v338
        %v521 = vpack.c.b16 %v503, %v502
        %v522 = vpack.c.b16 %v505, %v504
        %v523 = vpack.c.b16 %v507, %v506
        %v524 = vpack.c.b16 %v509, %v508
        %v525 = vpack.c.b16 %v511, %v510
        %v526 = vpack.c.b16 %v513, %v512
        %v527 = vpack.c.b16 %v515, %v514
        %v528 = vpack.c.b16 %v517, %v516
        %v529 = vpack.c.b16 %v519, %v518
        %v530 = vpack.c.b16 %v520, %v520
        %vm540 = vcmask 195584
        %v542 = vsel %vm540, %v436, 0
        %v545 = vsel %vm540, %v438, 0
        %v548 = vsel %vm540, %v440, 0
        %v551 = vsel %vm540, %v442, 0
        %v554 = vsel %vm540, %v444, 0
        %v557 = vsel %vm540, %v446, 0
        %v560 = vsel %vm540, %v448, 0
        %v563 = vsel %vm540, %v450, 0
        %v566 = vsel %vm540, %v452, 0
        %v569 = vsel %vm540, %v454, 0
        %v572 = vsel %vm540, %v456, 0
        %v575 = vsel %vm540, %v458, 0
        %v578 = vsel %vm540, %v460, 0
        %v581 = vsel %vm540, %v462, 0
        %v584 = vsel %vm540, %v464, 0
        %v587 = vsel %vm540, %v466, 0
        %vm589 = vcmask 1043456
        %v591 = vsel %vm589, %v530, 0
        %593 = vmatpush.bf16.msra.mxu0 %v528
        %594 = vmatpush.bf16.msra.mxu0 %v527
        %595 = vmatpush.bf16.msra.mxu0 %v526
        %596 = vmatpush.bf16.msra.mxu0 %v525
        %597 = vmatpush.bf16.msra.mxu0 %v524
        %598 = vmatpush.bf16.msra.mxu0 %v523
        %599 = vmatpush.bf16.msra.mxu0 %v522
        %600 = vmatpush.bf16.msra.mxu0 %v521
        %601 = vmatmul.bf16.gmra.mxu0 %v435
        %v602 = vpop.f32.mrf.mxu0
        %v603 = vadd.f32 0.0, %v602
        %v604 = vpop.f32.mrf.mxu0
        %v605 = vadd.f32 0.0, %v604
        %606 = vmatmul.bf16.gmra.mxu0 %v437
        %v607 = vpop.f32.mrf.mxu0
        %v608 = vadd.f32 0.0, %v607
        %v609 = vpop.f32.mrf.mxu0
        %v610 = vadd.f32 0.0, %v609
        %611 = vmatmul.bf16.gmra.mxu0 %v439
        %v612 = vpop.f32.mrf.mxu0
        %v613 = vadd.f32 0.0, %v612
        %v614 = vpop.f32.mrf.mxu0
        %v615 = vadd.f32 0.0, %v614
        %616 = vmatmul.bf16.gmra.mxu0 %v441
        %v617 = vpop.f32.mrf.mxu0
        %v618 = vadd.f32 0.0, %v617
        %v619 = vpop.f32.mrf.mxu0
        %v620 = vadd.f32 0.0, %v619
        %621 = vmatmul.bf16.gmra.mxu0 %v443
        %v622 = vpop.f32.mrf.mxu0
        %v623 = vadd.f32 0.0, %v622
        %v624 = vpop.f32.mrf.mxu0
        %v625 = vadd.f32 0.0, %v624
        %626 = vmatmul.bf16.gmra.mxu0 %v445
        %v627 = vpop.f32.mrf.mxu0
        %v628 = vadd.f32 0.0, %v627
        %v629 = vpop.f32.mrf.mxu0
        %v630 = vadd.f32 0.0, %v629
        %631 = vmatmul.bf16.gmra.mxu0 %v447
        %v632 = vpop.f32.mrf.mxu0
        %v633 = vadd.f32 0.0, %v632
        %v634 = vpop.f32.mrf.mxu0
        %v635 = vadd.f32 0.0, %v634
        %636 = vmatmul.bf16.gmra.mxu0 %v449
        %v637 = vpop.f32.mrf.mxu0
        %v638 = vadd.f32 0.0, %v637
        %v639 = vpop.f32.mrf.mxu0
        %v640 = vadd.f32 0.0, %v639
        %641 = vmatmul.bf16.gmra.mxu0 %v451
        %v642 = vpop.f32.mrf.mxu0
        %v643 = vadd.f32 0.0, %v642
        %v644 = vpop.f32.mrf.mxu0
        %v645 = vadd.f32 0.0, %v644
        %646 = vmatmul.bf16.gmra.mxu0 %v453
        %v647 = vpop.f32.mrf.mxu0
        %v648 = vadd.f32 0.0, %v647
        %v649 = vpop.f32.mrf.mxu0
        %v650 = vadd.f32 0.0, %v649
        %651 = vmatmul.bf16.gmra.mxu0 %v455
        %v652 = vpop.f32.mrf.mxu0
        %v653 = vadd.f32 0.0, %v652
        %v654 = vpop.f32.mrf.mxu0
        %v655 = vadd.f32 0.0, %v654
        %656 = vmatmul.bf16.gmra.mxu0 %v457
        %v657 = vpop.f32.mrf.mxu0
        %v658 = vadd.f32 0.0, %v657
        %v659 = vpop.f32.mrf.mxu0
        %v660 = vadd.f32 0.0, %v659
        %661 = vmatmul.bf16.gmra.mxu0 %v459
        %v662 = vpop.f32.mrf.mxu0
        %v663 = vadd.f32 0.0, %v662
        %v664 = vpop.f32.mrf.mxu0
        %v665 = vadd.f32 0.0, %v664
        %666 = vmatmul.bf16.gmra.mxu0 %v461
        %v667 = vpop.f32.mrf.mxu0
        %v668 = vadd.f32 0.0, %v667
        %v669 = vpop.f32.mrf.mxu0
        %v670 = vadd.f32 0.0, %v669
        %671 = vmatmul.bf16.gmra.mxu0 %v463
        %v672 = vpop.f32.mrf.mxu0
        %v673 = vadd.f32 0.0, %v672
        %v674 = vpop.f32.mrf.mxu0
        %v675 = vadd.f32 0.0, %v674
        %676 = vmatmul.bf16.gmra.mxu0 %v465
        %v677 = vpop.f32.mrf.mxu0
        %v678 = vadd.f32 0.0, %v677
        %v679 = vpop.f32.mrf.mxu0
        %v680 = vadd.f32 0.0, %v679
        %681 = vdwg.mxu0
        %682 = vmatpush.bf16.msra.mxu0 0
        %683 = vmatpush.bf16.msra.mxu0 0
        %684 = vmatpush.bf16.msra.mxu0 0
        %685 = vmatpush.bf16.msra.mxu0 0
        %686 = vmatpush.bf16.msra.mxu0 0
        %687 = vmatpush.bf16.msra.mxu0 0
        %688 = vmatpush.bf16.msra.mxu0 %v591
        %689 = vmatpush.bf16.msra.mxu0 %v529
        %690 = vmatmul.bf16.gmra.mxu0 %v542
        %v691 = vpop.f32.mrf.mxu0
        %v692 = vadd.f32 %v603, %v691
        %v693 = vpop.f32.mrf.mxu0
        %v694 = vadd.f32 %v605, %v693
        %695 = vmatmul.bf16.gmra.mxu0 %v545
        %v696 = vpop.f32.mrf.mxu0
        %v697 = vadd.f32 %v608, %v696
        %v698 = vpop.f32.mrf.mxu0
        %v699 = vadd.f32 %v610, %v698
        %700 = vmatmul.bf16.gmra.mxu0 %v548
        %v701 = vpop.f32.mrf.mxu0
        %v702 = vadd.f32 %v613, %v701
        %v703 = vpop.f32.mrf.mxu0
        %v704 = vadd.f32 %v615, %v703
        %705 = vmatmul.bf16.gmra.mxu0 %v551
        %v706 = vpop.f32.mrf.mxu0
        %v707 = vadd.f32 %v618, %v706
        %v708 = vpop.f32.mrf.mxu0
        %v709 = vadd.f32 %v620, %v708
        %710 = vmatmul.bf16.gmra.mxu0 %v554
        %v711 = vpop.f32.mrf.mxu0
        %v712 = vadd.f32 %v623, %v711
        %v713 = vpop.f32.mrf.mxu0
        %v714 = vadd.f32 %v625, %v713
        %715 = vmatmul.bf16.gmra.mxu0 %v557
        %v716 = vpop.f32.mrf.mxu0
        %v717 = vadd.f32 %v628, %v716
        %v718 = vpop.f32.mrf.mxu0
        %v719 = vadd.f32 %v630, %v718
        %720 = vmatmul.bf16.gmra.mxu0 %v560
        %v721 = vpop.f32.mrf.mxu0
        %v722 = vadd.f32 %v633, %v721
        %v723 = vpop.f32.mrf.mxu0
        %v724 = vadd.f32 %v635, %v723
        %725 = vmatmul.bf16.gmra.mxu0 %v563
        %v726 = vpop.f32.mrf.mxu0
        %v727 = vadd.f32 %v638, %v726
        %v728 = vpop.f32.mrf.mxu0
        %v729 = vadd.f32 %v640, %v728
        %730 = vmatmul.bf16.gmra.mxu0 %v566
        %v731 = vpop.f32.mrf.mxu0
        %v732 = vadd.f32 %v643, %v731
        %v733 = vpop.f32.mrf.mxu0
        %v734 = vadd.f32 %v645, %v733
        %735 = vmatmul.bf16.gmra.mxu0 %v569
        %v736 = vpop.f32.mrf.mxu0
        %v737 = vadd.f32 %v648, %v736
        %v738 = vpop.f32.mrf.mxu0
        %v739 = vadd.f32 %v650, %v738
        %740 = vmatmul.bf16.gmra.mxu0 %v572
        %v741 = vpop.f32.mrf.mxu0
        %v742 = vadd.f32 %v653, %v741
        %v743 = vpop.f32.mrf.mxu0
        %v744 = vadd.f32 %v655, %v743
        %745 = vmatmul.bf16.gmra.mxu0 %v575
        %v746 = vpop.f32.mrf.mxu0
        %v747 = vadd.f32 %v658, %v746
        %v748 = vpop.f32.mrf.mxu0
        %v749 = vadd.f32 %v660, %v748
        %750 = vmatmul.bf16.gmra.mxu0 %v578
        %v751 = vpop.f32.mrf.mxu0
        %v752 = vadd.f32 %v663, %v751
        %v753 = vpop.f32.mrf.mxu0
        %v754 = vadd.f32 %v665, %v753
        %755 = vmatmul.bf16.gmra.mxu0 %v581
        %v756 = vpop.f32.mrf.mxu0
        %v757 = vadd.f32 %v668, %v756
        %v758 = vpop.f32.mrf.mxu0
        %v759 = vadd.f32 %v670, %v758
        %760 = vmatmul.bf16.gmra.mxu0 %v584
        %v761 = vpop.f32.mrf.mxu0
        %v762 = vadd.f32 %v673, %v761
        %v763 = vpop.f32.mrf.mxu0
        %v764 = vadd.f32 %v675, %v763
        %765 = vmatmul.bf16.gmra.mxu0 %v587
        %v766 = vpop.f32.mrf.mxu0
        %v767 = vadd.f32 %v678, %v766
        %v768 = vpop.f32.mrf.mxu0
        %v769 = vadd.f32 %v680, %v768
        %770 = vdwg.mxu0
        %v771 = vadd.f32 %v256, %v692
        %v772 = vadd.f32 %v257, %v694
        %v773 = vadd.f32 %v258, %v697
        %v774 = vadd.f32 %v259, %v699
        %v775 = vadd.f32 %v260, %v702
        %v776 = vadd.f32 %v261, %v704
        %v777 = vadd.f32 %v262, %v707
        %v778 = vadd.f32 %v263, %v709
        %v779 = vadd.f32 %v264, %v712
        %v780 = vadd.f32 %v265, %v714
        %v781 = vadd.f32 %v266, %v717
        %v782 = vadd.f32 %v267, %v719
        %v783 = vadd.f32 %v268, %v722
        %v784 = vadd.f32 %v269, %v724
        %v785 = vadd.f32 %v270, %v727
        %v786 = vadd.f32 %v271, %v729
        %v787 = vadd.f32 %v272, %v732
        %v788 = vadd.f32 %v273, %v734
        %v789 = vadd.f32 %v274, %v737
        %v790 = vadd.f32 %v275, %v739
        %v791 = vadd.f32 %v276, %v742
        %v792 = vadd.f32 %v277, %v744
        %v793 = vadd.f32 %v278, %v747
        %v794 = vadd.f32 %v279, %v749
        %v795 = vadd.f32 %v280, %v752
        %v796 = vadd.f32 %v281, %v754
        %v797 = vadd.f32 %v282, %v757
        %v798 = vadd.f32 %v283, %v759
        %v799 = vadd.f32 %v284, %v762
        %v800 = vadd.f32 %v285, %v764
        %v801 = vadd.f32 %v286, %v767
        %v802 = vadd.f32 %v287, %v769
        %vm803 = vcmask 523264
        %804 = vst.msk [vmem:[#allocation2] sm:$0xff] %vm803, %v771
        %805 = vst.msk [vmem:[#allocation2 + $0x8] sm:$0xff] %vm803, %v772
        %806 = vst.msk [vmem:[#allocation2 + $0x10] sm:$0xff] %vm803, %v773
        %807 = vst.msk [vmem:[#allocation2 + $0x18] sm:$0xff] %vm803, %v774
        %808 = vst.msk [vmem:[#allocation2 + $0x20] sm:$0xff] %vm803, %v775
        %809 = vst.msk [vmem:[#allocation2 + $0x28] sm:$0xff] %vm803, %v776
        %810 = vst.msk [vmem:[#allocation2 + $0x30] sm:$0xff] %vm803, %v777
        %811 = vst.msk [vmem:[#allocation2 + $0x38] sm:$0xff] %vm803, %v778
        %812 = vst.msk [vmem:[#allocation2 + $0x40] sm:$0xff] %vm803, %v779
        %813 = vst.msk [vmem:[#allocation2 + $0x48] sm:$0xff] %vm803, %v780
        %814 = vst.msk [vmem:[#allocation2 + $0x50] sm:$0xff] %vm803, %v781
        %815 = vst.msk [vmem:[#allocation2 + $0x58] sm:$0xff] %vm803, %v782
        %816 = vst.msk [vmem:[#allocation2 + $0x60] sm:$0xff] %vm803, %v783
        %817 = vst.msk [vmem:[#allocation2 + $0x68] sm:$0xff] %vm803, %v784
        %818 = vst.msk [vmem:[#allocation2 + $0x70] sm:$0xff] %vm803, %v785
        %819 = vst.msk [vmem:[#allocation2 + $0x78] sm:$0xff] %vm803, %v786
        %820 = vst.msk [vmem:[#allocation2 + $0x80] sm:$0xff] %vm803, %v787
        %821 = vst.msk [vmem:[#allocation2 + $0x88] sm:$0xff] %vm803, %v788
        %822 = vst.msk [vmem:[#allocation2 + $0x90] sm:$0xff] %vm803, %v789
        %823 = vst.msk [vmem:[#allocation2 + $0x98] sm:$0xff] %vm803, %v790
        %824 = vst.msk [vmem:[#allocation2 + $0xa0] sm:$0xff] %vm803, %v791
        %825 = vst.msk [vmem:[#allocation2 + $0xa8] sm:$0xff] %vm803, %v792
        %826 = vst.msk [vmem:[#allocation2 + $0xb0] sm:$0xff] %vm803, %v793
        %827 = vst.msk [vmem:[#allocation2 + $0xb8] sm:$0xff] %vm803, %v794
        %828 = vst.msk [vmem:[#allocation2 + $0xc0] sm:$0xff] %vm803, %v795
        %829 = vst.msk [vmem:[#allocation2 + $0xc8] sm:$0xff] %vm803, %v796
        %830 = vst.msk [vmem:[#allocation2 + $0xd0] sm:$0xff] %vm803, %v797
        %831 = vst.msk [vmem:[#allocation2 + $0xd8] sm:$0xff] %vm803, %v798
        %832 = vst.msk [vmem:[#allocation2 + $0xe0] sm:$0xff] %vm803, %v799
        %833 = vst.msk [vmem:[#allocation2 + $0xe8] sm:$0xff] %vm803, %v800
        %834 = vst.msk [vmem:[#allocation2 + $0xf0] sm:$0xff] %vm803, %v801
        %835 = vst.msk [vmem:[#allocation2 + $0xf8] sm:$0xff] %vm803, %v802
        // Predicated region
        $region33: #{conv_im2col.1} parent=27 // pred_check
          %p836 = pneg %p219
        $region34: #{conv_im2col.1} parent=27 // pred_check_branch
          %838 = sbr.rel (%p836) target = $region36
        $region35: #{conv_im2col.1} parent=27 // pred_region
          %v839 = vld [vmem:[#allocation2] sm:$0xff]
          %v840 = vld [vmem:[#allocation2 + $0x8] sm:$0xff]
          %v841 = vld [vmem:[#allocation2 + $0x10] sm:$0xff]
          %v842 = vld [vmem:[#allocation2 + $0x18] sm:$0xff]
          %v843 = vld [vmem:[#allocation2 + $0x20] sm:$0xff]
          %v844 = vld [vmem:[#allocation2 + $0x28] sm:$0xff]
          %v845 = vld [vmem:[#allocation2 + $0x30] sm:$0xff]
          %v846 = vld [vmem:[#allocation2 + $0x38] sm:$0xff]
          %v847 = vld [vmem:[#allocation2 + $0x40] sm:$0xff]
          %v848 = vld [vmem:[#allocation2 + $0x48] sm:$0xff]
          %v849 = vld [vmem:[#allocation2 + $0x50] sm:$0xff]
          %v850 = vld [vmem:[#allocation2 + $0x58] sm:$0xff]
          %v851 = vld [vmem:[#allocation2 + $0x60] sm:$0xff]
          %v852 = vld [vmem:[#allocation2 + $0x68] sm:$0xff]
          %v853 = vld [vmem:[#allocation2 + $0x70] sm:$0xff]
          %v854 = vld [vmem:[#allocation2 + $0x78] sm:$0xff]
          %v855 = vld [vmem:[#allocation2 + $0x80] sm:$0xff]
          %v856 = vld [vmem:[#allocation2 + $0x88] sm:$0xff]
          %v857 = vld [vmem:[#allocation2 + $0x90] sm:$0xff]
          %v858 = vld [vmem:[#allocation2 + $0x98] sm:$0xff]
          %v859 = vld [vmem:[#allocation2 + $0xa0] sm:$0xff]
          %v860 = vld [vmem:[#allocation2 + $0xa8] sm:$0xff]
          %v861 = vld [vmem:[#allocation2 + $0xb0] sm:$0xff]
          %v862 = vld [vmem:[#allocation2 + $0xb8] sm:$0xff]
          %v863 = vld [vmem:[#allocation2 + $0xc0] sm:$0xff]
          %v864 = vld [vmem:[#allocation2 + $0xc8] sm:$0xff]
          %v865 = vld [vmem:[#allocation2 + $0xd0] sm:$0xff]
          %v866 = vld [vmem:[#allocation2 + $0xd8] sm:$0xff]
          %v867 = vld [vmem:[#allocation2 + $0xe0] sm:$0xff]
          %v868 = vld [vmem:[#allocation2 + $0xe8] sm:$0xff]
          %v869 = vld [vmem:[#allocation2 + $0xf0] sm:$0xff]
          %v870 = vld [vmem:[#allocation2 + $0xf8] sm:$0xff]
          %v871 = vmax.f32 %v839, 0.0
          %v872 = vmax.f32 %v840, 0.0
          %v873 = vmax.f32 %v841, 0.0
          %v874 = vmax.f32 %v842, 0.0
          %v875 = vmax.f32 %v843, 0.0
          %v876 = vmax.f32 %v844, 0.0
          %v877 = vmax.f32 %v845, 0.0
          %v878 = vmax.f32 %v846, 0.0
          %v879 = vmax.f32 %v847, 0.0
          %v880 = vmax.f32 %v848, 0.0
          %v881 = vmax.f32 %v849, 0.0
          %v882 = vmax.f32 %v850, 0.0
          %v883 = vmax.f32 %v851, 0.0
          %v884 = vmax.f32 %v852, 0.0
          %v885 = vmax.f32 %v853, 0.0
          %v886 = vmax.f32 %v854, 0.0
          %v887 = vmax.f32 %v855, 0.0
          %v888 = vmax.f32 %v856, 0.0
          %v889 = vmax.f32 %v857, 0.0
          %v890 = vmax.f32 %v858, 0.0
          %v891 = vmax.f32 %v859, 0.0
          %v892 = vmax.f32 %v860, 0.0
          %v893 = vmax.f32 %v861, 0.0
          %v894 = vmax.f32 %v862, 0.0
          %v895 = vmax.f32 %v863, 0.0
          %v896 = vmax.f32 %v864, 0.0
          %v897 = vmax.f32 %v865, 0.0
          %v898 = vmax.f32 %v866, 0.0
          %v899 = vmax.f32 %v867, 0.0
          %v900 = vmax.f32 %v868, 0.0
          %v901 = vmax.f32 %v869, 0.0
          %v902 = vmax.f32 %v870, 0.0
          %v903 = vpack.c.bf16 %v871, %v871
          %v904 = vpack.c.bf16 %v872, %v872
          %v905 = vpack.c.bf16 %v873, %v873
          %v906 = vpack.c.bf16 %v874, %v874
          %v907 = vpack.c.bf16 %v875, %v875
          %v908 = vpack.c.bf16 %v876, %v876
          %v909 = vpack.c.bf16 %v877, %v877
          %v910 = vpack.c.bf16 %v878, %v878
          %v911 = vpack.c.bf16 %v879, %v879
          %v912 = vpack.c.bf16 %v880, %v880
          %v913 = vpack.c.bf16 %v881, %v881
          %v914 = vpack.c.bf16 %v882, %v882
          %v915 = vpack.c.bf16 %v883, %v883
          %v916 = vpack.c.bf16 %v884, %v884
          %v917 = vpack.c.bf16 %v885, %v885
          %v918 = vpack.c.bf16 %v886, %v886
          %v919 = vpack.c.bf16 %v887, %v887
          %v920 = vpack.c.bf16 %v888, %v888
          %v921 = vpack.c.bf16 %v889, %v889
          %v922 = vpack.c.bf16 %v890, %v890
          %v923 = vpack.c.bf16 %v891, %v891
          %v924 = vpack.c.bf16 %v892, %v892
          %v925 = vpack.c.bf16 %v893, %v893
          %v926 = vpack.c.bf16 %v894, %v894
          %v927 = vpack.c.bf16 %v895, %v895
          %v928 = vpack.c.bf16 %v896, %v896
          %v929 = vpack.c.bf16 %v897, %v897
          %v930 = vpack.c.bf16 %v898, %v898
          %v931 = vpack.c.bf16 %v899, %v899
          %v932 = vpack.c.bf16 %v900, %v900
          %v933 = vpack.c.bf16 %v901, %v901
          %v934 = vpack.c.bf16 %v902, %v902
          %vm935 = vcmask 519168
          %936 = vst.msk [vmem:[%s195] sm:$0xf] %vm935, %v903
          %937 = vst.msk [vmem:[%s195 + $0x4] sm:$0xf] %vm935, %v904
          %938 = vst.msk [vmem:[%s195 + $0x8] sm:$0xf] %vm935, %v905
          %939 = vst.msk [vmem:[%s195 + $0xc] sm:$0xf] %vm935, %v906
          %940 = vst.msk [vmem:[%s195 + $0x10] sm:$0xf] %vm935, %v907
          %941 = vst.msk [vmem:[%s195 + $0x14] sm:$0xf] %vm935, %v908
          %942 = vst.msk [vmem:[%s195 + $0x18] sm:$0xf] %vm935, %v909
          %943 = vst.msk [vmem:[%s195 + $0x1c] sm:$0xf] %vm935, %v910
          %944 = vst.msk [vmem:[%s195 + $0x20] sm:$0xf] %vm935, %v911
          %945 = vst.msk [vmem:[%s195 + $0x24] sm:$0xf] %vm935, %v912
          %946 = vst.msk [vmem:[%s195 + $0x28] sm:$0xf] %vm935, %v913
          %947 = vst.msk [vmem:[%s195 + $0x2c] sm:$0xf] %vm935, %v914
          %948 = vst.msk [vmem:[%s195 + $0x30] sm:$0xf] %vm935, %v915
          %949 = vst.msk [vmem:[%s195 + $0x34] sm:$0xf] %vm935, %v916
          %950 = vst.msk [vmem:[%s195 + $0x38] sm:$0xf] %vm935, %v917
          %951 = vst.msk [vmem:[%s195 + $0x3c] sm:$0xf] %vm935, %v918
          %952 = vst.msk [vmem:[%s195 + $0x40] sm:$0xf] %vm935, %v919
          %953 = vst.msk [vmem:[%s195 + $0x44] sm:$0xf] %vm935, %v920
          %954 = vst.msk [vmem:[%s195 + $0x48] sm:$0xf] %vm935, %v921
          %955 = vst.msk [vmem:[%s195 + $0x4c] sm:$0xf] %vm935, %v922
          %956 = vst.msk [vmem:[%s195 + $0x50] sm:$0xf] %vm935, %v923
          %957 = vst.msk [vmem:[%s195 + $0x54] sm:$0xf] %vm935, %v924
          %958 = vst.msk [vmem:[%s195 + $0x58] sm:$0xf] %vm935, %v925
          %959 = vst.msk [vmem:[%s195 + $0x5c] sm:$0xf] %vm935, %v926
          %960 = vst.msk [vmem:[%s195 + $0x60] sm:$0xf] %vm935, %v927
          %961 = vst.msk [vmem:[%s195 + $0x64] sm:$0xf] %vm935, %v928
          %962 = vst.msk [vmem:[%s195 + $0x68] sm:$0xf] %vm935, %v929
          %963 = vst.msk [vmem:[%s195 + $0x6c] sm:$0xf] %vm935, %v930
          %964 = vst.msk [vmem:[%s195 + $0x70] sm:$0xf] %vm935, %v931
          %965 = vst.msk [vmem:[%s195 + $0x74] sm:$0xf] %vm935, %v932
          %966 = vst.msk [vmem:[%s195 + $0x78] sm:$0xf] %vm935, %v933
          %967 = vst.msk [vmem:[%s195 + $0x7c] sm:$0xf] %vm935, %v934
        $region36: #{conv_im2col.1} parent=27 // pred_fallthru
          _
        %s968 = sand.u32 %s101, 1
        %s969 = scalar_lea.sflag [#allocation4], %s968
        %s970 = sand.u32 %s101, 1
        %s971 = smul.addr %s970, 128
        %s972 = scalar_lea.vmem [#allocation3], %s971
        // Predicated region
        $region37: #{conv_im2col.1} parent=27 // pred_check
          %p973 = pneg %p111
        $region38: #{conv_im2col.1} parent=27 // pred_check_branch
          %975 = sbr.rel (%p973) target = $region40
        $region39: #{conv_im2col.1} parent=27 // pred_region
          %s976 = smul.u32 32, %s21
          %978 = vsyncadd %s969, 0
          %s979 = sadd.s32 %s22, %s976
          %s980 = smul.addr %s979, 4
          %s981 = scalar_lea.hbm %s2, %s980
          %s982 = sshll.u32 %s972, 4
          %s983 = int_to_ptr.vmem [resolvable:$true] %s982
          %s984 = sshll.u32 %s981, 4
          %s985 = int_to_ptr.hbm [resolvable:$true] %s984
          %990 = dma.vmem_to_hbm [thread:$0]  %s983, 2048, %s985, %s969, 64, 64, 4
        $region40: #{conv_im2col.1} parent=27 // pred_fallthru
          _
      $region28: #{conv_im2col.1} parent=5 // pred_fallthru
        _
      %p991 = scmp.le.s32.totalorder 2, %s11
      // Predicated region
      $region41: #{conv_im2col.1} parent=5 // pred_check
        %p992 = pneg %p991
      $region42: #{conv_im2col.1} parent=5 // pred_check_branch
        %994 = sbr.rel (%p992) target = $region44
      $region43: #{conv_im2col.1} parent=5 // pred_region
        %s995 = ssub.s32 %s11, 2
        // Predicated region
        $region45: #{conv_im2col.1} parent=43 // pred_check
          %p996 = pneg %p117
        $region46: #{conv_im2col.1} parent=43 // pred_check_branch
          %998 = sbr.rel (%p996) target = $region48
        $region47: #{conv_im2col.1} parent=43 // pred_region
          %s999 = sand.u32 %s102, 1
          %s1000 = scalar_lea.sflag [#allocation4], %s999
          %s1001 = sand.u32 %s102, 1
          %s1002 = smul.addr %s1001, 128
          %s1003 = scalar_lea.vmem [#allocation3], %s1002
          %1005 = dma.done %s1000, 2048
        $region48: #{conv_im2col.1} parent=43 // pred_fallthru
          _
      $region44: #{conv_im2col.1} parent=5 // pred_fallthru
        _
    $region6: #{conv_im2col.1} parent=1 // loop_footer
      %s15 = sadd.s32 1, %s11
    $region7: #{conv_im2col.1} parent=1 // loop_footer_branch
      %10 = sbr.rel target = $region3
    $region8: #{conv_im2col.1} parent=1 // loop_exit
      _
    %1006 = vsyncpa [#allocation4], 1
    %s1007 = scalar_lea.sflag [#allocation4], 1
    %1008 = vsyncpa %s1007, 1

</llo_original>
